<compile_context>
chip_gen: v7x
topology: tpu7x:2x2x1
jax: 0.10.0
libtpu: 0.0.40
codegen_flags: <defaults>
</compile_context>

<pallas_src>
import math

import jax
import jax.numpy as jnp
from jax.experimental import pallas as pl
from jax.experimental.pallas import tpu as pltpu


def _pe_broadcast_kernel(pe_ref, out_ref):
    # pe_ref : (1, THW)  positional-encoding chunk (VMEM)
    # out_ref: (TB, THW) lane-dense output block for the current (hw, batch) tile
    # Sublane broadcast of one row; cost is fully hidden under the HBM
    # writeback stream (this kernel is pure store/DMA-bound).
    out_ref[...] = jnp.broadcast_to(pe_ref[...], out_ref.shape)


def _vmem_capacity_bytes():
    # Generation-aware sizing; conservative (v7x = 64 MiB) fallback if the
    # query is unavailable.
    try:
        return int(pltpu.get_tpu_info().vmem_capacity_bytes)
    except Exception:
        return 64 * 1024 * 1024


def tmae_positional_embedding(x, lookup_weight, *, max_block_bytes=None):
    """Forward pass of TMAE_PositionalEmbedding.

    x:             (B, C, H, W) — only its shape is used (exactly like PyTorch).
    lookup_weight: (max_position, 1) embedding table.
    returns:       (B, 1, H, W) float32.
    """
    B = x.shape[0]
    H, W = x.shape[-2], x.shape[-1]
    HW = H * W
    assert HW <= lookup_weight.shape[0], "max_position too small for H*W"

    # Glue: static slice + row-major flatten of the parameter (matches torch
    # .reshape on a contiguous tensor).  Done once in the wrapper.
    pe = lookup_weight[:HW, 0].reshape(1, HW).astype(jnp.float32)

    # ---- block sizing (generation aware) -----------------------------------
    vmem_cap = _vmem_capacity_bytes()
    if max_block_bytes is None:
        # ~8 MiB blocks on v7x (64 MiB VMEM) and v6e/v5e (128 MiB); already on
        # the flat part of the throughput-vs-block-size curve everywhere.
        max_block_bytes = min(8 * 1024 * 1024, vmem_cap // 8)

    row_bytes = HW * 4
    if 8 * row_bytes <= max_block_bytes:
        # Common case: keep the full spatial extent in one lane-dense block.
        thw = HW
        tb = max(8, max_block_bytes // row_bytes)
        tb = (tb // 8) * 8
    else:
        # Very large H*W: also tile the spatial axis (multiples of 128 lanes)
        # so the double-buffered block stays inside scoped VMEM.
        tb = 8
        thw = (max_block_bytes // (tb * 4) // 128) * 128
        thw = max(128, min(thw, HW))
    n_hw = pl.cdiv(HW, thw)

    # v7x has 2 TensorCores: make sure a non-trivial output gets >= 2 parallel
    # grid steps so megacore sharding can split the batch tiles.
    if n_hw == 1 and B > 8 and B * row_bytes > (2 << 20):
        half_b = ((B + 1) // 2 + 7) // 8 * 8
        tb = min(tb, max(8, half_b))

    if tb >= B:
        tb = B                      # single block == full array dim (allowed)
    n_b = pl.cdiv(B, tb)

    # Spatial tiles OUTER, batch tiles INNER: the tiny pe block index only
    # changes with the (slow) outer axis, so pe is DMA'd exactly n_hw times
    # (exactly once in the common n_hw == 1 case — constant index_map).
    grid = (n_hw, n_b)

    # Raise the scoped-VMEM limit so the double-buffered output block fits on
    # every generation (v5e default is only 16 MiB); keep well under physical.
    block_bytes = tb * thw * 4
    vmem_needed = 2 * block_bytes + 2 * thw * 4 + (1 << 20)
    vmem_limit = int(min(vmem_cap // 2, max(vmem_needed, 32 << 20)))

    # Note: if H*W is not a multiple of 128 (e.g. 14*14=196) the store path
    # uses masked vst on the ragged lane tail; a lane-dense repack of pe into
    # a (R, 1024) slab would remove that, at the cost of much hairier index
    # maps.  Left out here since typical TMAE spatial sizes are 128-aligned.
    out_flat = pl.pallas_call(
        _pe_broadcast_kernel,
        out_shape=jax.ShapeDtypeStruct((B, HW), jnp.float32),
        grid_spec=pltpu.PrefetchScalarGridSpec(
            num_scalar_prefetch=0,
            grid=grid,
            # pe: same (1, thw) chunk for every batch tile of a given hw tile.
            in_specs=[pl.BlockSpec((1, thw), lambda w, b: (0, w))],
            # one lane-dense (tb, thw) output block per (hw, batch) tile.
            out_specs=pl.BlockSpec((tb, thw), lambda w, b: (b, w)),
        ),
        compiler_params=pltpu.CompilerParams(
            dimension_semantics=("parallel", "parallel"),
            vmem_limit_bytes=vmem_limit),
        cost_estimate=pl.CostEstimate(
            flops=0,
            transcendentals=0,
            bytes_accessed=B * HW * 4 + HW * 4),
    )(pe)

    # Reshape back to the PyTorch output layout (free layout plumbing).
    return out_flat.reshape(B, 1, H, W)


def init_position_lookuptable(key, max_position=512):
    # nn.Embedding(max_position, 1).weight with xavier_uniform_:
    # fan_in = 1, fan_out = max_position, bound = sqrt(6 / (fan_in + fan_out)).
    bound = math.sqrt(6.0 / (1.0 + max_position))
    return jax.random.uniform(
        key, (max_position, 1), jnp.float32, minval=-bound, maxval=bound)


if __name__ == "__main__":
    key = jax.random.PRNGKey(0)
    k_w, k_x = jax.random.split(key)

    max_position = 512
    weight = init_position_lookuptable(k_w, max_position)

    # --- test 1: small NCHW input (C arbitrary; only B, H, W matter) --------
    B, C, H, W = 2, 4, 16, 16          # H*W = 256 <= max_position
    x = jax.random.normal(k_x, (B, C, H, W), jnp.float32)

    out = tmae_positional_embedding(x, weight)
    out = jax.block_until_ready(out)

    ref = jnp.broadcast_to(weight[: H * W, 0].reshape(1, 1, H, W), (B, 1, H, W))
    assert out.shape == (B, 1, H, W)
    assert out.dtype == jnp.float32
    assert jnp.allclose(out, ref), "mismatch vs reference (test 1)"

    # --- test 2: force multiple batch tiles incl. a partial last tile -------
    B2, C2, H2, W2 = 20, 3, 14, 14     # H*W = 196 <= max_position, B % tb != 0
    x2 = jax.random.normal(k_x, (B2, C2, H2, W2), jnp.float32)
    out2 = tmae_positional_embedding(x2, weight, max_block_bytes=8 * 1024)
    out2 = jax.block_until_ready(out2)
    ref2 = jnp.broadcast_to(
        weight[: H2 * W2, 0].reshape(1, 1, H2, W2), (B2, 1, H2, W2))
    assert out2.shape == (B2, 1, H2, W2)
    assert jnp.allclose(out2, ref2), "mismatch vs reference (test 2)"

    print("KERNEL_OK")
</pallas_src>

<mosaic_0001>
module attributes {stable_mosaic.version = 11 : i64} {
  func.func @_pe_broadcast_kernel(%arg0: i32, %arg1: i32, %arg2: memref<1x256xf32, #tpu.memory_space<vmem>>, %arg3: memref<2x256xf32, #tpu.memory_space<vmem>>) attributes {dimension_semantics = [#tpu.dimension_semantics<parallel>, #tpu.dimension_semantics<parallel>], iteration_bounds = array<i64: 1, 1>, scalar_prefetch = 0 : i64, scratch_operands = 0 : i64, tpu.core_type = #tpu.core_type<tc>, window_params = [{transform_indices = @transform_0, window_bounds = array<i64: 1, 256>}, {transform_indices = @transform_1, window_bounds = array<i64: 2, 256>}]} {
    %c0 = arith.constant 0 : index
    %c0_0 = arith.constant 0 : index
    %0 = vector.load %arg2[%c0, %c0_0] : memref<1x256xf32, #tpu.memory_space<vmem>>, vector<1x256xf32>
    %1 = vector.shape_cast %0 : vector<1x256xf32> to vector<1x256xf32>
    %2 = vector.broadcast %1 : vector<1x256xf32> to vector<2x256xf32>
    %c0_1 = arith.constant 0 : index
    %c0_2 = arith.constant 0 : index
    %3 = vector.load %arg3[%c0_1, %c0_2] : memref<2x256xf32, #tpu.memory_space<vmem>>, vector<2x256xf32>
    tpu.vector_store %arg3[%c0_1, %c0_2], %2 {strides = array<i32>} : memref<2x256xf32, #tpu.memory_space<vmem>>, vector<2x256xf32>,
    return
  }
  func.func @transform_0(%arg0: i32, %arg1: i32) -> (i32, i32) {
    %c0_i32 = arith.constant 0 : i32
    %c0_i32_0 = arith.constant 0 : i32
    return %c0_i32, %arg0 : i32, i32
  }
  func.func @transform_1(%arg0: i32, %arg1: i32) -> (i32, i32) {
    %c0_i32 = arith.constant 0 : i32
    return %arg1, %arg0 : i32, i32
  }
}

</mosaic_0001>

<llo_original>
// kernel: tpu_custom_call.1
$region0: #{tpu_custom_call.1}
  #allocation0 [shape = 'u32[]', space=smem, size = 0x4, offset = 0x4, fixed_abs, tag = 'smem constant byte address 0x4 - core index']
  #allocation1 [shape = 'u32[144,128]{1,0:T(1,128)}', space=vmem, size = 0x12000, scoped, tag = 'internal scratch']
  %s0 = inlined_call_operand.hbm [shape: f32[1,256], index: 0, kind: input, shape index: {}]
  %s1 = inlined_call_operand.hbm [shape: f32[2,256], index: 1, kind: output, shape index: {}]
  %s2 = sld [smem:[#allocation0]]
  $region18: #{tpu_custom_call.1} parent=0
    _
  %s4 = ssub.s32 1, %s2
  %s5 = scalar_select 0, %s4, %s2
  $region1: #{tpu_custom_call.1} parent=0
    #allocation2 [shape = 'u8[1024]{0}', space=vmem, size = 0x400, scoped, tag = 'input window, operand 0, single buffered']
    #allocation3 [shape = 's32[1]{0}', space=sflag, size = 0x4, scoped, tag = 'scoped memory for tpu_custom_call.1']
    #allocation4 [shape = 's32[1]{0}', space=sflag, size = 0x4, scoped, tag = 'scoped memory for tpu_custom_call.1']
    #allocation5 [shape = 'u8[2048]{0}', space=vmem, size = 0x800, scoped, tag = 'output window, operand 0, single buffered']
    %6 = vsyncpa [#allocation3], 0
    %7 = vsyncpa [#allocation4], 0
    // Predicated region
    $region2: #{tpu_custom_call.1} parent=1 // pred_check
      _
    $region3: #{tpu_custom_call.1} parent=1 // pred_check_branch
      %9 = sbr.rel (0) target = $region5
    $region4: #{tpu_custom_call.1} parent=1 // pred_region
      %s11 = ssub.s32 32, 32
      %12 = vsyncadd [#allocation3], %s11
      %s14 = sshll.u32 [#allocation2], 4
      %s15 = int_to_ptr.vmem [resolvable:$true] %s14
      %17 = dma.hbm_to_vmem [thread:$0]  %s0, 32, %s15, [#allocation3]
    $region5: #{tpu_custom_call.1} parent=1 // pred_fallthru
      _
    // Predicated region
    $region6: #{tpu_custom_call.1} parent=1 // pred_check
      _
    $region7: #{tpu_custom_call.1} parent=1 // pred_check_branch
      %19 = sbr.rel (0) target = $region9
    $region8: #{tpu_custom_call.1} parent=1 // pred_region
      %20 = dma.done [#allocation3], 32
    $region9: #{tpu_custom_call.1} parent=1 // pred_fallthru
      _
    %v21 = vld [vmem:[#allocation2] sm:$0x3]
    %v23 = vlaneseq
    %v24 = vshrl.u32 %v23, 7
    %v25 = vsub.s32 0, %v24
    %v26 = vrot.slane %v21, %v25
    %v27 = vlaneseq
    %v28 = vshrl.u32 %v27, 7
    %v29 = vsub.s32 1, %v28
    %v30 = vrot.slane %v21, %v29
    %v31 = vcombine.low %v26, %v30
    %v33 = vunpack.c.l.s4 1983009808
    %v34 = vunpack.c.0.s8 %v33
    %v35 = vlaneseq
    %v36 = vshrl.u32 %v35, 7
    %v37 = vsub.s32 %v34, %v36
    %v38 = vrot.slane %v31, %v37
    %40 = vst [vmem:[#allocation5] sm:$0xf] %v38
    // Predicated region
    $region10: #{tpu_custom_call.1} parent=1 // pred_check
      _
    $region11: #{tpu_custom_call.1} parent=1 // pred_check_branch
      %42 = sbr.rel (0) target = $region13
    $region12: #{tpu_custom_call.1} parent=1 // pred_region
      %s44 = ssub.s32 64, 64
      %45 = vsyncadd [#allocation4], %s44
      %s47 = sshll.u32 [#allocation5], 4
      %s48 = int_to_ptr.vmem [resolvable:$true] %s47
      %50 = dma.vmem_to_hbm [thread:$0]  %s48, 64, %s1, [#allocation4]
    $region13: #{tpu_custom_call.1} parent=1 // pred_fallthru
      _
    // Predicated region
    $region14: #{tpu_custom_call.1} parent=1 // pred_check
      _
    $region15: #{tpu_custom_call.1} parent=1 // pred_check_branch
      %52 = sbr.rel (0) target = $region17
    $region16: #{tpu_custom_call.1} parent=1 // pred_region
      %53 = dma.done [#allocation4], 64
    $region17: #{tpu_custom_call.1} parent=1 // pred_fallthru
      _
    %54 = vsyncpa [#allocation3], 1
    %55 = vsyncpa [#allocation4], 1

</llo_original>
